<compile_context>
chip_gen: v6e
topology: v6e:2x2x1
jax: 0.10.0
libtpu: 0.0.40
codegen_flags: <defaults>
</compile_context>

<pallas_src>
import functools

import jax
import jax.numpy as jnp
from jax.experimental import pallas as pl
from jax.experimental.pallas import tpu as pltpu


def _round_up(n: int, m: int) -> int:
    return ((n + m - 1) // m) * m


def _nla_kernel(x_ref, wa_ref, w123_ref, wo_ref, out_ref, x12_ref, x3_ref):
    # x_ref   : (Tp, Cp)   bf16  full (padded) sequence of current batch element
    # wa_ref  : (tq, Tp)   bf16  q-tile of attention weights for current batch
    # w123_ref: (Cp, 3*Hp) bf16  fused [w1 | w2 | w3] projection weights
    # wo_ref  : (Hp, Cp)   bf16  output projection weight
    # out_ref : (tq, Cp)   f32   output tile
    # x12_ref : (Tp, Hp)   bf16  scratch: tanh(x@w1) + x@w2 (reused across q)
    # x3_ref  : (Tp, Hp)   f32   scratch: x@w3              (reused across q)
    q = pl.program_id(1)
    tq = out_ref.shape[0]
    Hp = x12_ref.shape[1]

    # Per-batch projections: computed once (first q-tile), reused for all q-tiles.
    @pl.when(q == 0)
    def _():
        proj = jnp.dot(x_ref[...], w123_ref[...],
                       preferred_element_type=jnp.float32)       # (Tp, 3*Hp) f32
        x1 = jnp.tanh(proj[:, :Hp])
        x2 = proj[:, Hp:2 * Hp]
        x12_ref[...] = (x1 + x2).astype(x12_ref.dtype)
        x3_ref[...] = proj[:, 2 * Hp:]

    # Attention application for this q-tile: (tq, Tp) @ (Tp, Hp) -> f32 acc.
    y = jnp.dot(wa_ref[...], x12_ref[...],
                preferred_element_type=jnp.float32)              # (tq, Hp)

    # Gate with x3 rows of this q-tile, then output projection.
    row0 = pl.multiple_of(q * tq, 8)
    gated = (y * x3_ref[pl.ds(row0, tq), :]).astype(wo_ref.dtype)  # (tq, Hp) bf16
    out_ref[...] = jnp.dot(gated, wo_ref[...],
                           preferred_element_type=jnp.float32).astype(out_ref.dtype)


@functools.partial(jax.jit, static_argnames=("tq_target",))
def nonlinear_attention(x, w_a, w1, w2, w3, wo, *, tq_target=128):
    """x: (B,T,C), w_a: (B,T,T), w1/w2/w3: (C,H), wo: (H,C) -> (B,T,C)."""
    B, T, C = x.shape
    H = w1.shape[1]
    assert w_a.shape == (B, T, T)
    assert w1.shape == (C, H) and w2.shape == (C, H) and w3.shape == (C, H)
    assert wo.shape == (H, C)

    cd = jnp.bfloat16  # MXU-native compute dtype (f32 accumulation in-kernel)

    # Lane-dense padded sizes.
    Cp = _round_up(C, 128)
    Hp = _round_up(H, 128)
    tq = min(_round_up(T, 8), _round_up(tq_target, 8))
    Tp = _round_up(T, tq)
    nq = Tp // tq

    # --- wrapper-side padding / fusing (zero padding keeps semantics exact) ---
    x_p = jnp.zeros((B, Tp, Cp), cd).at[:, :T, :C].set(x.astype(cd))
    wa_p = jnp.zeros((B, Tp, Tp), cd).at[:, :T, :T].set(w_a.astype(cd))

    w123 = jnp.zeros((Cp, 3 * Hp), cd)
    w123 = w123.at[:C, 0:H].set(w1.astype(cd))
    w123 = w123.at[:C, Hp:Hp + H].set(w2.astype(cd))
    w123 = w123.at[:C, 2 * Hp:2 * Hp + H].set(w3.astype(cd))
    wo_p = jnp.zeros((Hp, Cp), cd).at[:H, :C].set(wo.astype(cd))

    # Rough VMEM budget (double-buffered tiles + resident weights + scratch).
    bpe = jnp.dtype(cd).itemsize
    need = (2 * Tp * Cp * bpe            # x block
            + 2 * tq * Tp * bpe          # w_a tiles
            + 2 * tq * Cp * 4            # output tiles (f32)
            + Cp * 3 * Hp * bpe          # fused projection weights (resident)
            + Hp * Cp * bpe              # output weights (resident)
            + Tp * Hp * (bpe + 4))       # x12 (bf16) + x3 (f32) scratch
    vmem_limit = min(max(int(need * 1.5) + (1 << 20), 32 << 20), 48 << 20)

    grid_spec = pltpu.PrefetchScalarGridSpec(
        num_scalar_prefetch=0,
        grid=(B, nq),
        in_specs=[
            # Full (padded) sequence of the current batch element (reused over q).
            pl.BlockSpec((pl.Squeezed(), Tp, Cp), lambda b, q: (b, 0, 0)),
            # q-tile of attention weights: streams over the sequence.
            pl.BlockSpec((pl.Squeezed(), tq, Tp), lambda b, q: (b, q, 0)),
            # Shared weights: constant index -> resident in VMEM.
            pl.BlockSpec((Cp, 3 * Hp), lambda b, q: (0, 0)),
            pl.BlockSpec((Hp, Cp), lambda b, q: (0, 0)),
        ],
        out_specs=pl.BlockSpec((pl.Squeezed(), tq, Cp), lambda b, q: (b, q, 0)),
        scratch_shapes=[
            pltpu.VMEM((Tp, Hp), cd),          # x12 = tanh(x@w1) + x@w2
            pltpu.VMEM((Tp, Hp), jnp.float32),  # x3  = x@w3
        ],
    )

    out_p = pl.pallas_call(
        _nla_kernel,
        out_shape=jax.ShapeDtypeStruct((B, Tp, Cp), jnp.float32),
        grid_spec=grid_spec,
        compiler_params=pltpu.CompilerParams(
            # q-axis carries the x12/x3 scratch dependency -> "arbitrary".
            dimension_semantics=("parallel", "arbitrary"),
            vmem_limit_bytes=vmem_limit,
        ),
    )(x_p, wa_p, w123, wo_p)

    return out_p[:, :T, :C].astype(x.dtype)


def nonlinear_attention_ref(x, w_a, w1, w2, w3, wo, compute_dtype=jnp.bfloat16):
    """Pure-JAX reference mirroring the kernel's bf16-operand / f32-acc policy."""
    f32 = jnp.float32
    c = lambda a: a.astype(compute_dtype).astype(f32)
    hi = jax.lax.Precision.HIGHEST
    x1 = jnp.tanh(jnp.einsum("btc,ch->bth", c(x), c(w1), precision=hi))
    x2 = jnp.einsum("btc,ch->bth", c(x), c(w2), precision=hi)
    x3 = jnp.einsum("btc,ch->bth", c(x), c(w3), precision=hi)
    x12 = c(x1 + x2)
    y = jnp.einsum("bts,bsh->bth", c(w_a), x12, precision=hi)
    return jnp.einsum("bth,hc->btc", c(y * x3), c(wo), precision=hi)


if __name__ == "__main__":
    # Small, module-consistent shapes: batch=2, seq=8, n_embd=32, head_size=16.
    B, T, C, H = 2, 8, 32, 16

    key = jax.random.PRNGKey(0)
    kx, ka, k1, k2, k3, ko = jax.random.split(key, 6)

    x = jax.random.normal(kx, (B, T, C), dtype=jnp.float32)

    # Externally supplied attention weights (softmax-normalized rows).
    w_a = jax.nn.softmax(jax.random.normal(ka, (B, T, T), dtype=jnp.float32), axis=-1)

    # Deterministic parameter init (nn.Linear-style fan-in scaling, no bias).
    w1 = jax.random.normal(k1, (C, H), dtype=jnp.float32) * (1.0 / C) ** 0.5
    w2 = jax.random.normal(k2, (C, H), dtype=jnp.float32) * (1.0 / C) ** 0.5
    w3 = jax.random.normal(k3, (C, H), dtype=jnp.float32) * (1.0 / C) ** 0.5
    wo = jax.random.normal(ko, (H, C), dtype=jnp.float32) * (1.0 / H) ** 0.5

    out = nonlinear_attention(x, w_a, w1, w2, w3, wo)
    out = jax.block_until_ready(out)

    ref = nonlinear_attention_ref(x, w_a, w1, w2, w3, wo)
    assert out.shape == (B, T, C)
    max_err = float(jnp.max(jnp.abs(out - ref)))
    assert jnp.allclose(out, ref, atol=1e-2, rtol=1e-2), (
        f"mismatch vs reference, max abs err = {max_err}")

    print("KERNEL_OK")
</pallas_src>

<mosaic_0001>
module attributes {stable_mosaic.version = 11 : i64} {
  func.func @_nla_kernel(%arg0: i32, %arg1: i32, %arg2: memref<1x8x128xbf16, #tpu.memory_space<vmem>>, %arg3: memref<1x8x8xbf16, #tpu.memory_space<vmem>>, %arg4: memref<128x384xbf16, #tpu.memory_space<vmem>>, %arg5: memref<128x128xbf16, #tpu.memory_space<vmem>>, %arg6: memref<1x8x128xf32, #tpu.memory_space<vmem>>, %arg7: memref<8x128xbf16, #tpu.memory_space<vmem>>, %arg8: memref<8x128xf32, #tpu.memory_space<vmem>>) attributes {dimension_semantics = [#tpu.dimension_semantics<parallel>, #tpu.dimension_semantics<arbitrary>], iteration_bounds = array<i64: 2, 1>, scalar_prefetch = 0 : i64, scratch_operands = 2 : i64, tpu.core_type = #tpu.core_type<tc>, window_params = [{transform_indices = @transform_0, window_bounds = array<i64: 1, 8, 128>}, {transform_indices = @transform_1, window_bounds = array<i64: 1, 8, 8>}, {pipeline_mode = #tpu.pipeline_mode<synchronous>, transform_indices = @transform_2, window_bounds = array<i64: 128, 384>}, {pipeline_mode = #tpu.pipeline_mode<synchronous>, transform_indices = @transform_3, window_bounds = array<i64: 128, 128>}, {transform_indices = @transform_4, window_bounds = array<i64: 1, 8, 128>}]} {
    %c0_i32 = arith.constant 0 : i32
    %0 = arith.cmpi eq, %arg1, %c0_i32 : i32
    %1 = arith.extui %0 : i1 to i32
    %c0_i32_0 = arith.constant 0 : i32
    %2 = arith.cmpi ne, %1, %c0_i32_0 : i32
    scf.if %2 {
      %c0_12 = arith.constant 0 : index
      %c0_13 = arith.constant 0 : index
      %c0_14 = arith.constant 0 : index
      %18 = vector.load %arg2[%c0_12, %c0_13, %c0_14] : memref<1x8x128xbf16, #tpu.memory_space<vmem>>, vector<1x8x128xbf16>
      %19 = vector.shape_cast %18 : vector<1x8x128xbf16> to vector<8x128xbf16>
      %c0_15 = arith.constant 0 : index
      %c0_16 = arith.constant 0 : index
      %20 = vector.load %arg4[%c0_15, %c0_16] : memref<128x384xbf16, #tpu.memory_space<vmem>>, vector<128x384xbf16>
      %cst_17 = arith.constant dense<0.000000e+00> : vector<8x384xf32>
      %21 = tpu.matmul %19, %20, %cst_17 {dimension_numbers = #tpu.dot_dimension_numbers<[1], [0], [0], [1], [0, 0, 1, 1], [], []>} : vector<8x128xbf16>, vector<128x384xbf16>, vector<8x384xf32> -> vector<8x384xf32>
      %22 = vector.extract_strided_slice %21 {offsets = [0, 0], sizes = [8, 128], strides = [1, 1]} : vector<8x384xf32> to vector<8x128xf32>
      %23 = math.tanh %22 : vector<8x128xf32>
      %24 = vector.extract_strided_slice %21 {offsets = [0, 128], sizes = [8, 128], strides = [1, 1]} : vector<8x384xf32> to vector<8x128xf32>
      %25 = arith.addf %23, %24 : vector<8x128xf32>
      %26 = arith.truncf %25 : vector<8x128xf32> to vector<8x128xbf16>
      %c0_18 = arith.constant 0 : index
      %c0_19 = arith.constant 0 : index
      %27 = vector.load %arg7[%c0_18, %c0_19] : memref<8x128xbf16, #tpu.memory_space<vmem>>, vector<8x128xbf16>
      tpu.vector_store %arg7[%c0_18, %c0_19], %26 {strides = array<i32>} : memref<8x128xbf16, #tpu.memory_space<vmem>>, vector<8x128xbf16>,
      %28 = vector.extract_strided_slice %21 {offsets = [0, 256], sizes = [8, 128], strides = [1, 1]} : vector<8x384xf32> to vector<8x128xf32>
      %c0_20 = arith.constant 0 : index
      %c0_21 = arith.constant 0 : index
      %29 = vector.load %arg8[%c0_20, %c0_21] : memref<8x128xf32, #tpu.memory_space<vmem>>, vector<8x128xf32>
      tpu.vector_store %arg8[%c0_20, %c0_21], %28 {strides = array<i32>} : memref<8x128xf32, #tpu.memory_space<vmem>>, vector<8x128xf32>,
    } else {
    }
    %c0 = arith.constant 0 : index
    %c0_1 = arith.constant 0 : index
    %c0_2 = arith.constant 0 : index
    %3 = vector.load %arg3[%c0, %c0_1, %c0_2] : memref<1x8x8xbf16, #tpu.memory_space<vmem>>, vector<1x8x8xbf16>
    %4 = vector.shape_cast %3 : vector<1x8x8xbf16> to vector<8x8xbf16>
    %c0_3 = arith.constant 0 : index
    %c0_4 = arith.constant 0 : index
    %5 = vector.load %arg7[%c0_3, %c0_4] : memref<8x128xbf16, #tpu.memory_space<vmem>>, vector<8x128xbf16>
    %cst = arith.constant dense<0.000000e+00> : vector<8x128xf32>
    %6 = tpu.matmul %4, %5, %cst {dimension_numbers = #tpu.dot_dimension_numbers<[1], [0], [0], [1], [0, 0, 1, 1], [], []>} : vector<8x8xbf16>, vector<8x128xbf16>, vector<8x128xf32> -> vector<8x128xf32>
    %c8_i32 = arith.constant 8 : i32
    %7 = arith.muli %arg1, %c8_i32 : i32
    %8 = tpu.assume_multiple %7, 8 : i32
    %9 = arith.index_cast %8 : i32 to index
    %c0_5 = arith.constant 0 : index
    %10 = vector.load %arg8[%9, %c0_5] : memref<8x128xf32, #tpu.memory_space<vmem>>, vector<8x128xf32>
    %11 = arith.mulf %6, %10 : vector<8x128xf32>
    %12 = arith.truncf %11 : vector<8x128xf32> to vector<8x128xbf16>
    %c0_6 = arith.constant 0 : index
    %c0_7 = arith.constant 0 : index
    %13 = vector.load %arg5[%c0_6, %c0_7] : memref<128x128xbf16, #tpu.memory_space<vmem>>, vector<128x128xbf16>
    %cst_8 = arith.constant dense<0.000000e+00> : vector<8x128xf32>
    %14 = tpu.matmul %12, %13, %cst_8 {dimension_numbers = #tpu.dot_dimension_numbers<[1], [0], [0], [1], [0, 0, 1, 1], [], []>} : vector<8x128xbf16>, vector<128x128xbf16>, vector<8x128xf32> -> vector<8x128xf32>
    %c0_9 = arith.constant 0 : index
    %c0_10 = arith.constant 0 : index
    %c0_11 = arith.constant 0 : index
    %15 = vector.load %arg6[%c0_9, %c0_10, %c0_11] : memref<1x8x128xf32, #tpu.memory_space<vmem>>, vector<1x8x128xf32>
    %16 = vector.shape_cast %15 : vector<1x8x128xf32> to vector<8x128xf32>
    %17 = vector.shape_cast %14 : vector<8x128xf32> to vector<1x8x128xf32>
    tpu.vector_store %arg6[%c0_9, %c0_10, %c0_11], %17 {strides = array<i32>} : memref<1x8x128xf32, #tpu.memory_space<vmem>>, vector<1x8x128xf32>,
    return
  }
  func.func @transform_0(%arg0: i32, %arg1: i32) -> (i32, i32, i32) {
    %c0_i32 = arith.constant 0 : i32
    %c0_i32_0 = arith.constant 0 : i32
    %c0_i32_1 = arith.constant 0 : i32
    return %arg0, %c0_i32, %c0_i32_0 : i32, i32, i32
  }
  func.func @transform_1(%arg0: i32, %arg1: i32) -> (i32, i32, i32) {
    %c0_i32 = arith.constant 0 : i32
    %c0_i32_0 = arith.constant 0 : i32
    return %arg0, %arg1, %c0_i32 : i32, i32, i32
  }
  func.func @transform_2(%arg0: i32, %arg1: i32) -> (i32, i32) {
    %c0_i32 = arith.constant 0 : i32
    %c0_i32_0 = arith.constant 0 : i32
    %c0_i32_1 = arith.constant 0 : i32
    return %c0_i32, %c0_i32_0 : i32, i32
  }
  func.func @transform_3(%arg0: i32, %arg1: i32) -> (i32, i32) {
    %c0_i32 = arith.constant 0 : i32
    %c0_i32_0 = arith.constant 0 : i32
    %c0_i32_1 = arith.constant 0 : i32
    return %c0_i32, %c0_i32_0 : i32, i32
  }
  func.func @transform_4(%arg0: i32, %arg1: i32) -> (i32, i32, i32) {
    %c0_i32 = arith.constant 0 : i32
    %c0_i32_0 = arith.constant 0 : i32
    return %arg0, %arg1, %c0_i32 : i32, i32, i32
  }
}

</mosaic_0001>

<llo_original>
// kernel: nonlinear_attention.1
$region0: #{nonlinear_attention.1}
  #allocation0 [shape = 'u32[]', space=smem, size = 0x4, offset = 0x4, fixed_abs, tag = 'smem constant byte address 0x4 - core index']
  #allocation1 [shape = 'u32[144,128]{1,0:T(1,128)}', space=vmem, size = 0x12000, scoped, tag = 'internal scratch']
  #allocation2 [shape = 'bf16[8,128]{1,0:T(8,128)(2,1)}', space=vmem, size = 0x800, scoped, tag = 'scratch operand']
  #allocation3 [shape = 'f32[8,128]{1,0:T(8,128)}', space=vmem, size = 0x1000, scoped, tag = 'scratch operand']
  %s0 = inlined_call_operand.vmem [shape: bf16[2,8,128], index: 0, kind: input, shape index: {}]
  %s1 = inlined_call_operand.vmem [shape: bf16[2,8,8], index: 1, kind: input, shape index: {}]
  %s2 = inlined_call_operand.vmem [shape: bf16[128,384], index: 2, kind: input, shape index: {}]
  %s3 = inlined_call_operand.vmem [shape: bf16[128,128], index: 3, kind: input, shape index: {}]
  %s4 = inlined_call_operand.hbm [shape: f32[2,8,128], index: 4, kind: output, shape index: {}]
  %s5 = sld [smem:[#allocation0]]
  $region53: #{nonlinear_attention.1} parent=0
    _
  %s7 = ssub.s32 1, %s5
  %s8 = scalar_select 0, %s7, %s5
  $region1: #{nonlinear_attention.1} parent=0
    #allocation4 [shape = 'u8[8192]{0}', space=vmem, size = 0x2000, scoped, tag = 'output window, operand 0']
    #allocation5 [shape = 's32[2]{0}', space=sflag, size = 0x8, scoped, tag = 'scoped memory for nonlinear_attention.1']
    %9 = vsyncpa [#allocation5], 0
    %s10 = scalar_lea.sflag [#allocation5], 1
    %11 = vsyncpa %s10, 0
    loop: start=0, step=1, limit=4
    $region2: #{nonlinear_attention.1} parent=1 // loop_pre_header
      _
    $region3: #{nonlinear_attention.1} parent=1 // loop_header
      %s13 = sphi 0, %s17
      %p14 = scmp.ge.s32.totalorder %s13, 4
      %s20 = sphi 0, %s32
      %s21 = sphi 0, %s28
      %s22 = sphi 0, %s20
      %s23 = sphi 0, %s21
      %s24 = sphi 0, %s22
      %s25 = sphi 0, %s23
      %s35 = sphi 0, %s37
      %s38 = sphi 0, %s35
      %s39 = sphi 0, %s38
      %s55 = sphi 0, %s39
      %s63 = sphi 0, %s65
      %s66 = sphi 0, %s63
      %s67 = sphi 0, %s66
      %s83 = sphi 0, %s67
      %s87 = sphi 0, %s87
      %s89 = sphi 0, %s87
      %s90 = sphi 0, %s89
      %s104 = sphi 0, %s90
      %s108 = sphi 0, %s108
      %s110 = sphi 0, %s108
      %s111 = sphi 0, %s110
      %s125 = sphi 0, %s111
      %s133 = sphi 0, %s135
      %s136 = sphi 0, %s133
      %s137 = sphi 0, %s136
      %s153 = sphi 0, %s137
    $region4: #{nonlinear_attention.1} parent=1 // loop_header_branch
      %16 = sbr.rel (%p14) target = $region8
    $region5: #{nonlinear_attention.1} parent=1 // loop_body
      %s18 = ssub.s32 %s13, 1
      %s19 = ssub.s32 %s13, 2
      %s26 = sadd.s32 1, %s21
      %p27 = scmp.ge.s32.totalorder %s26, 1
      %s28 = scalar_select %p27, 0, %s26
      %s29 = sadd.s32 1, %s20
      %s30 = scalar_select %p27, %s29, %s20
      %p31 = scmp.ge.s32.totalorder %s30, 2
      %s32 = scalar_select %p31, 0, %s30
      %s33 = ssub.s32 %s20, %s32
      %p34 = scmp.eq.s32.totalorder %s33, 0
      %s36 = sadd.s32 %s35, 1
      %s37 = scalar_select %p34, %s35, %s36
      %p40 = pneg %p34
      %p41 = scmp.eq.s32.totalorder %s13, 1
      %p42 = por %p40, %p41
      %p43 = scmp.ne.s32.totalorder %s35, %s38
      %p44 = scmp.eq.s32.totalorder %s13, 0
      %p45 = por %p43, %p44
      %p46 = scmp.ne.s32.totalorder %s35, %s38
      %p47 = scmp.eq.s32.totalorder %s18, 1
      %p48 = por %p46, %p47
      %p49 = scmp.ne.s32.totalorder %s38, %s39
      %p50 = scmp.eq.s32.totalorder %s18, 0
      %p51 = por %p49, %p50
      %p52 = scmp.ne.s32.totalorder %s38, %s39
      %p53 = scmp.eq.s32.totalorder %s19, 1
      %p54 = por %p52, %p53
      %p56 = scmp.ne.s32.totalorder %s39, %s55
      %p57 = scmp.eq.s32.totalorder %s19, 0
      %p58 = por %p56, %p57
      %s59 = ssub.s32 %s20, %s32
      %s60 = ssub.s32 %s21, %s28
      %s61 = sor.u32 %s59, %s60
      %p62 = scmp.eq.s32.totalorder %s61, 0
      %s64 = sadd.s32 %s63, 1
      %s65 = scalar_select %p62, %s63, %s64
      %p68 = pneg %p62
      %p69 = scmp.eq.s32.totalorder %s13, 1
      %p70 = por %p68, %p69
      %p71 = scmp.ne.s32.totalorder %s63, %s66
      %p72 = scmp.eq.s32.totalorder %s13, 0
      %p73 = por %p71, %p72
      %p74 = scmp.ne.s32.totalorder %s63, %s66
      %p75 = scmp.eq.s32.totalorder %s18, 1
      %p76 = por %p74, %p75
      %p77 = scmp.ne.s32.totalorder %s66, %s67
      %p78 = scmp.eq.s32.totalorder %s18, 0
      %p79 = por %p77, %p78
      %p80 = scmp.ne.s32.totalorder %s66, %s67
      %p81 = scmp.eq.s32.totalorder %s19, 1
      %p82 = por %p80, %p81
      %p84 = scmp.ne.s32.totalorder %s67, %s83
      %p85 = scmp.eq.s32.totalorder %s19, 0
      %p86 = por %p84, %p85
      %s88 = sadd.s32 %s87, 1
      %p91 = scmp.eq.s32.totalorder %s13, 1
      %p92 = scmp.ne.s32.totalorder %s87, %s89
      %p93 = scmp.eq.s32.totalorder %s13, 0
      %p94 = por %p92, %p93
      %p95 = scmp.ne.s32.totalorder %s87, %s89
      %p96 = scmp.eq.s32.totalorder %s18, 1
      %p97 = por %p95, %p96
      %p98 = scmp.ne.s32.totalorder %s89, %s90
      %p99 = scmp.eq.s32.totalorder %s18, 0
      %p100 = por %p98, %p99
      %p101 = scmp.ne.s32.totalorder %s89, %s90
      %p102 = scmp.eq.s32.totalorder %s19, 1
      %p103 = por %p101, %p102
      %p105 = scmp.ne.s32.totalorder %s90, %s104
      %p106 = scmp.eq.s32.totalorder %s19, 0
      %p107 = por %p105, %p106
      %s109 = sadd.s32 %s108, 1
      %p112 = scmp.eq.s32.totalorder %s13, 1
      %p113 = scmp.ne.s32.totalorder %s108, %s110
      %p114 = scmp.eq.s32.totalorder %s13, 0
      %p115 = por %p113, %p114
      %p116 = scmp.ne.s32.totalorder %s108, %s110
      %p117 = scmp.eq.s32.totalorder %s18, 1
      %p118 = por %p116, %p117
      %p119 = scmp.ne.s32.totalorder %s110, %s111
      %p120 = scmp.eq.s32.totalorder %s18, 0
      %p121 = por %p119, %p120
      %p122 = scmp.ne.s32.totalorder %s110, %s111
      %p123 = scmp.eq.s32.totalorder %s19, 1
      %p124 = por %p122, %p123
      %p126 = scmp.ne.s32.totalorder %s111, %s125
      %p127 = scmp.eq.s32.totalorder %s19, 0
      %p128 = por %p126, %p127
      %s129 = ssub.s32 %s20, %s32
      %s130 = ssub.s32 %s21, %s28
      %s131 = sor.u32 %s129, %s130
      %p132 = scmp.eq.s32.totalorder %s131, 0
      %s134 = sadd.s32 %s133, 1
      %s135 = scalar_select %p132, %s133, %s134
      %p138 = pneg %p132
      %p139 = scmp.eq.s32.totalorder %s13, 1
      %p140 = por %p138, %p139
      %p141 = scmp.ne.s32.totalorder %s133, %s136
      %p142 = scmp.eq.s32.totalorder %s13, 0
      %p143 = por %p141, %p142
      %p144 = scmp.ne.s32.totalorder %s133, %s136
      %p145 = scmp.eq.s32.totalorder %s18, 1
      %p146 = por %p144, %p145
      %p147 = scmp.ne.s32.totalorder %s136, %s137
      %p148 = scmp.eq.s32.totalorder %s18, 0
      %p149 = por %p147, %p148
      %p150 = scmp.ne.s32.totalorder %s136, %s137
      %p151 = scmp.eq.s32.totalorder %s19, 1
      %p152 = por %p150, %p151
      %p154 = scmp.ne.s32.totalorder %s137, %s153
      %p155 = scmp.eq.s32.totalorder %s19, 0
      %p156 = por %p154, %p155
      %p157 = scmp.le.s32.totalorder 1, %s13
      %p158 = scmp.lt.s32.totalorder %s13, 3
      %p159 = pnand %p157, %p158
      %p160 = pneg %p159
      // Predicated region
      $region9: #{nonlinear_attention.1} parent=5 // pred_check
        _
      $region10: #{nonlinear_attention.1} parent=5 // pred_check_branch
        %162 = sbr.rel (%p159) target = $region12
      $region11: #{nonlinear_attention.1} parent=5 // pred_region
        %s163 = ssub.s32 %s13, 1
        // Predicated region
        $region13: #{nonlinear_attention.1} parent=11 // pred_check
          %p164 = pneg %p100
        $region14: #{nonlinear_attention.1} parent=11 // pred_check_branch
          %166 = sbr.rel (%p164) target = $region16
        $region15: #{nonlinear_attention.1} parent=11 // pred_region
          _
        $region16: #{nonlinear_attention.1} parent=11 // pred_fallthru
          _
        // Predicated region
        $region17: #{nonlinear_attention.1} parent=11 // pred_check
          %p167 = pneg %p121
        $region18: #{nonlinear_attention.1} parent=11 // pred_check_branch
          %169 = sbr.rel (%p167) target = $region20
        $region19: #{nonlinear_attention.1} parent=11 // pred_region
          _
        $region20: #{nonlinear_attention.1} parent=11 // pred_fallthru
          _
      $region12: #{nonlinear_attention.1} parent=5 // pred_fallthru
        _
      %p170 = scmp.lt.s32.totalorder %s13, 2
      // Predicated region
      $region21: #{nonlinear_attention.1} parent=5 // pred_check
        %p171 = pneg %p170
      $region22: #{nonlinear_attention.1} parent=5 // pred_check_branch
        %173 = sbr.rel (%p171) target = $region24
      $region23: #{nonlinear_attention.1} parent=5 // pred_region
        // Predicated region
        $region25: #{nonlinear_attention.1} parent=23 // pred_check
          %p174 = pneg %p45
        $region26: #{nonlinear_attention.1} parent=23 // pred_check_branch
          %176 = sbr.rel (%p174) target = $region28
        $region27: #{nonlinear_attention.1} parent=23 // pred_region
          %p177 = scmp.lt.s32.totalorder %s20, 1
          %s178 = scalar_select %p177, %s20, 1
          %s179 = smul.addr %s178, 4
          %s180 = scalar_lea.vmem %s0, %s179
        $region28: #{nonlinear_attention.1} parent=23 // pred_fallthru
          _
        // Predicated region
        $region29: #{nonlinear_attention.1} parent=23 // pred_check
          %p181 = pneg %p73
        $region30: #{nonlinear_attention.1} parent=23 // pred_check_branch
          %183 = sbr.rel (%p181) target = $region32
        $region31: #{nonlinear_attention.1} parent=23 // pred_region
          %p184 = scmp.lt.s32.totalorder %s20, 1
          %s185 = scalar_select %p184, %s20, 1
          %p186 = scmp.lt.s32.totalorder %s21, 0
          %s187 = scalar_select %p186, %s21, 0
          %s188 = sadd.s32 %s187, %s185
          %s189 = smul.addr %s188, 4
          %s190 = scalar_lea.vmem %s1, %s189
        $region32: #{nonlinear_attention.1} parent=23 // pred_fallthru
          _
      $region24: #{nonlinear_attention.1} parent=5 // pred_fallthru
        _
      %p191 = scmp.le.s32.totalorder 1, %s13
      %p192 = scmp.lt.s32.totalorder %s13, 3
      %p193 = pnand %p191, %p192
      %p194 = pneg %p193
      // Predicated region
      $region33: #{nonlinear_attention.1} parent=5 // pred_check
        _
      $region34: #{nonlinear_attention.1} parent=5 // pred_check_branch
        %196 = sbr.rel (%p193) target = $region36
      $region35: #{nonlinear_attention.1} parent=5 // pred_region
        %s197 = ssub.s32 %s13, 1
        %p198 = scmp.lt.s32.totalorder %s22, 1
        %s199 = scalar_select %p198, %s22, 1
        %s200 = smul.addr %s199, 4
        %s201 = scalar_lea.vmem %s0, %s200
        %p202 = pneg %p51
        %p203 = pneg %p48
        %p204 = scmp.lt.s32.totalorder %s22, 1
        %s205 = scalar_select %p204, %s22, 1
        %p206 = scmp.lt.s32.totalorder %s23, 0
        %s207 = scalar_select %p206, %s23, 0
        %s208 = sadd.s32 %s207, %s205
        %s209 = smul.addr %s208, 4
        %s210 = scalar_lea.vmem %s1, %s209
        %p211 = pneg %p79
        %p212 = pneg %p76
        %p213 = pneg %p100
        %p214 = pneg %p97
        %p215 = pneg %p121
        %p216 = pneg %p118
        %p217 = pneg %p149
        %p218 = pneg %p146
        %s219 = sand.u32 %s136, 1
        %s220 = scalar_lea.sflag [#allocation5], %s219
        %s221 = sand.u32 %s136, 1
        %s222 = smul.addr %s221, 8
        %s223 = scalar_lea.vmem [#allocation4], %s222
        %p224 = scmp.lt.s32.totalorder %s22, 1
        %s225 = scalar_select %p224, %s22, 1
        %s226 = smul.addr %s225, 4
        %s227 = scalar_lea.vmem %s0, %s226
        %p228 = scmp.lt.s32.totalorder %s22, 1
        %s229 = scalar_select %p228, %s22, 1
        %p230 = scmp.lt.s32.totalorder %s23, 0
        %s231 = scalar_select %p230, %s23, 0
        %s232 = sadd.s32 %s231, %s229
        %s233 = smul.addr %s232, 4
        %s234 = scalar_lea.vmem %s1, %s233
        %p236 = scmp.eq.s32.totalorder %s23, 0
        // Predicated region
        $region37: #{nonlinear_attention.1} parent=35 // pred_check
          %p237 = pneg %p236
        $region38: #{nonlinear_attention.1} parent=35 // pred_check_branch
          %239 = sbr.rel (%p237) target = $region40
        $region39: #{nonlinear_attention.1} parent=35 // pred_region
          %v240 = vld [vmem:[%s227] sm:$0xf]
          %v241 = vld [vmem:[%s2] sm:$0xff]
          %v242 = vld [vmem:[%s2 + $0x8] sm:$0xf]
          %v243 = vld [vmem:[%s2 + $0xc] sm:$0xff]
          %v244 = vld [vmem:[%s2 + $0x14] sm:$0xf]
          %v245 = vld [vmem:[%s2 + $0x18] sm:$0xff]
          %v246 = vld [vmem:[%s2 + $0x20] sm:$0xf]
          %v247 = vld [vmem:[%s2 + $0x24] sm:$0xff]
          %v248 = vld [vmem:[%s2 + $0x2c] sm:$0xf]
          %v249 = vld [vmem:[%s2 + $0x30] sm:$0xff]
          %v250 = vld [vmem:[%s2 + $0x38] sm:$0xf]
          %v251 = vld [vmem:[%s2 + $0x3c] sm:$0xff]
          %v252 = vld [vmem:[%s2 + $0x44] sm:$0xf]
          %v253 = vld [vmem:[%s2 + $0x48] sm:$0xff]
          %v254 = vld [vmem:[%s2 + $0x50] sm:$0xf]
          %v255 = vld [vmem:[%s2 + $0x54] sm:$0xff]
          %v256 = vld [vmem:[%s2 + $0x5c] sm:$0xf]
          %v257 = vld [vmem:[%s2 + $0x60] sm:$0xff]
          %v258 = vld [vmem:[%s2 + $0x68] sm:$0xf]
          %v259 = vld [vmem:[%s2 + $0x6c] sm:$0xff]
          %v260 = vld [vmem:[%s2 + $0x74] sm:$0xf]
          %v261 = vld [vmem:[%s2 + $0x78] sm:$0xff]
          %v262 = vld [vmem:[%s2 + $0x80] sm:$0xf]
          %v263 = vld [vmem:[%s2 + $0x84] sm:$0xff]
          %v264 = vld [vmem:[%s2 + $0x8c] sm:$0xf]
          %v265 = vld [vmem:[%s2 + $0x90] sm:$0xff]
          %v266 = vld [vmem:[%s2 + $0x98] sm:$0xf]
          %v267 = vld [vmem:[%s2 + $0x9c] sm:$0xff]
          %v268 = vld [vmem:[%s2 + $0xa4] sm:$0xf]
          %v269 = vld [vmem:[%s2 + $0xa8] sm:$0xff]
          %v270 = vld [vmem:[%s2 + $0xb0] sm:$0xf]
          %v271 = vld [vmem:[%s2 + $0xb4] sm:$0xff]
          %v272 = vld [vmem:[%s2 + $0xbc] sm:$0xf]
          %v305 = vunpack.c.l.b16 %v241
          %v306 = vunpack.c.h.b16 %v241
          %v307 = vunpack.c.l.b16 %v242
          %v308 = vunpack.c.l.b16 %v243
          %v309 = vunpack.c.h.b16 %v243
          %v310 = vunpack.c.l.b16 %v244
          %v311 = vunpack.c.l.b16 %v245
          %v312 = vunpack.c.h.b16 %v245
          %v313 = vunpack.c.l.b16 %v246
          %v314 = vunpack.c.l.b16 %v247
          %v315 = vunpack.c.h.b16 %v247
          %v316 = vunpack.c.l.b16 %v248
          %v317 = vunpack.c.l.b16 %v249
          %v318 = vunpack.c.h.b16 %v249
          %v319 = vunpack.c.l.b16 %v250
          %v320 = vunpack.c.l.b16 %v251
          %v321 = vunpack.c.h.b16 %v251
          %v322 = vunpack.c.l.b16 %v252
          %v323 = vunpack.c.l.b16 %v253
          %v324 = vunpack.c.h.b16 %v253
          %v325 = vunpack.c.l.b16 %v254
          %v326 = vunpack.c.l.b16 %v255
          %v327 = vunpack.c.h.b16 %v255
          %v328 = vunpack.c.l.b16 %v256
          %v329 = vunpack.c.l.b16 %v257
          %v330 = vunpack.c.h.b16 %v257
          %v331 = vunpack.c.l.b16 %v258
          %v332 = vunpack.c.l.b16 %v259
          %v333 = vunpack.c.h.b16 %v259
          %v334 = vunpack.c.l.b16 %v260
          %v335 = vunpack.c.l.b16 %v261
          %v336 = vunpack.c.h.b16 %v261
          %v337 = vunpack.c.l.b16 %v262
          %v338 = vunpack.c.l.b16 %v263
          %v339 = vunpack.c.h.b16 %v263
          %v340 = vunpack.c.l.b16 %v264
          %v341 = vunpack.c.l.b16 %v265
          %v342 = vunpack.c.h.b16 %v265
          %v343 = vunpack.c.l.b16 %v266
          %v344 = vunpack.c.l.b16 %v267
          %v345 = vunpack.c.h.b16 %v267
          %v346 = vunpack.c.l.b16 %v268
          %v347 = vunpack.c.l.b16 %v269
          %v348 = vunpack.c.h.b16 %v269
          %v349 = vunpack.c.l.b16 %v270
          %v350 = vunpack.c.l.b16 %v271
          %v351 = vunpack.c.h.b16 %v271
          %v352 = vunpack.c.l.b16 %v272
          %v353 = vpack.c.b16 %v308, %v305
          %v354 = vpack.c.b16 %v309, %v306
          %v355 = vpack.c.b16 %v310, %v307
          %v356 = vpack.c.b16 %v314, %v311
          %v357 = vpack.c.b16 %v315, %v312
          %v358 = vpack.c.b16 %v316, %v313
          %v359 = vpack.c.b16 %v320, %v317
          %v360 = vpack.c.b16 %v321, %v318
          %v361 = vpack.c.b16 %v322, %v319
          %v362 = vpack.c.b16 %v326, %v323
          %v363 = vpack.c.b16 %v327, %v324
          %v364 = vpack.c.b16 %v328, %v325
          %v365 = vpack.c.b16 %v332, %v329
          %v366 = vpack.c.b16 %v333, %v330
          %v367 = vpack.c.b16 %v334, %v331
          %v368 = vpack.c.b16 %v338, %v335
          %v369 = vpack.c.b16 %v339, %v336
          %v370 = vpack.c.b16 %v340, %v337
          %v371 = vpack.c.b16 %v344, %v341
          %v372 = vpack.c.b16 %v345, %v342
          %v373 = vpack.c.b16 %v346, %v343
          %v374 = vpack.c.b16 %v350, %v347
          %v375 = vpack.c.b16 %v351, %v348
          %v376 = vpack.c.b16 %v352, %v349
          %401 = vmatprep.subr.bf16.mxu0 %v375
          %402 = vmatpush1.bf16.msra.mxu0 %v374
          %403 = vmatprep.subr.bf16.mxu0 %v372
          %404 = vmatpush1.bf16.msra.mxu0 %v371
          %405 = vmatprep.subr.bf16.mxu0 %v369
          %406 = vmatpush1.bf16.msra.mxu0 %v368
          %407 = vmatprep.subr.bf16.mxu0 %v366
          %408 = vmatpush1.bf16.msra.mxu0 %v365
          %409 = vmatprep.subr.bf16.mxu0 %v363
          %410 = vmatpush1.bf16.msra.mxu0 %v362
          %411 = vmatprep.subr.bf16.mxu0 %v360
          %412 = vmatpush1.bf16.msra.mxu0 %v359
          %413 = vmatprep.subr.bf16.mxu0 %v357
          %414 = vmatpush1.bf16.msra.mxu0 %v356
          %415 = vmatprep.subr.bf16.mxu0 %v354
          %416 = vmatpush1.bf16.msra.mxu0 %v353
          %417 = vmatprep.subr.bf16.mxu0 0
          %418 = vmatpush2.bf16.msra.mxu0 0
          %419 = vmatprep.subr.bf16.mxu0 0
          %420 = vmatpush2.bf16.msra.mxu0 0
          %421 = vmatprep.subr.bf16.mxu0 0
          %422 = vmatpush2.bf16.msra.mxu0 0
          %423 = vmatprep.subr.bf16.mxu0 0
          %424 = vmatpush2.bf16.msra.mxu0 0
          %425 = vmatprep.subr.bf16.mxu0 0
          %426 = vmatpush2.bf16.msra.mxu0 0
          %427 = vmatprep.subr.bf16.mxu0 0
          %428 = vmatpush2.bf16.msra.mxu0 0
          %429 = vmatprep.subr.bf16.mxu0 0
          %430 = vmatpush2.bf16.msra.mxu0 0
          %431 = vmatprep.subr.bf16.mxu0 0
          %432 = vmatpush2.bf16.msra.mxu0 0
          %433 = vmatprep.mubr.bf16.mxu0 0
          %434 = vmatmul.mubr.bf16.gmra.mxu0 %v240
          %v435 = vpop.f32.mrf.mxu0
          %v436 = vadd.f32 0.0, %v435
          %v437 = vpop.f32.mrf.mxu0
          %v438 = vadd.f32 0.0, %v437
          %v439 = vpop.f32.mrf.mxu0
          %v440 = vpop.f32.mrf.mxu0
          %441 = vdwg.mxu0
          %442 = vmatprep.subr.bf16.mxu0 0
          %443 = vmatpush1.bf16.msra.mxu0 %v376
          %444 = vmatprep.subr.bf16.mxu0 0
          %445 = vmatpush1.bf16.msra.mxu0 %v373
          %446 = vmatprep.subr.bf16.mxu0 0
          %447 = vmatpush1.bf16.msra.mxu0 %v370
          %448 = vmatprep.subr.bf16.mxu0 0
          %449 = vmatpush1.bf16.msra.mxu0 %v367
          %450 = vmatprep.subr.bf16.mxu0 0
          %451 = vmatpush1.bf16.msra.mxu0 %v364
          %452 = vmatprep.subr.bf16.mxu0 0
          %453 = vmatpush1.bf16.msra.mxu0 %v361
          %454 = vmatprep.subr.bf16.mxu0 0
          %455 = vmatpush1.bf16.msra.mxu0 %v358
          %456 = vmatprep.subr.bf16.mxu0 0
          %457 = vmatpush1.bf16.msra.mxu0 %v355
          %458 = vmatprep.subr.bf16.mxu0 0
          %459 = vmatpush2.bf16.msra.mxu0 0
          %460 = vmatprep.subr.bf16.mxu0 0
          %461 = vmatpush2.bf16.msra.mxu0 0
          %462 = vmatprep.subr.bf16.mxu0 0
          %463 = vmatpush2.bf16.msra.mxu0 0
          %464 = vmatprep.subr.bf16.mxu0 0
          %465 = vmatpush2.bf16.msra.mxu0 0
          %466 = vmatprep.subr.bf16.mxu0 0
          %467 = vmatpush2.bf16.msra.mxu0 0
          %468 = vmatprep.subr.bf16.mxu0 0
          %469 = vmatpush2.bf16.msra.mxu0 0
          %470 = vmatprep.subr.bf16.mxu0 0
          %471 = vmatpush2.bf16.msra.mxu0 0
          %472 = vmatprep.subr.bf16.mxu0 0
          %473 = vmatpush2.bf16.msra.mxu0 0
          %474 = vmatprep.mubr.bf16.mxu0 0
          %475 = vmatmul.mubr.bf16.gmra.mxu0 %v240
          %v476 = vpop.f32.mrf.mxu0
          %v477 = vadd.f32 0.0, %v476
          %v478 = vpop.f32.mrf.mxu0
          %v479 = vpop.f32.mrf.mxu0
          %v480 = vpop.f32.mrf.mxu0
          %481 = vdwg.mxu0
          %v482 = vtanh.pop %v436
          %v483 = vadd.f32 %v482, %v438
          %v484 = vpack.c.bf16 %v483, %v483
          %485 = vst [vmem:[#allocation2] sm:$0xf] %v484
          %486 = vst [vmem:[#allocation3] sm:$0xff] %v477
        $region40: #{nonlinear_attention.1} parent=35 // pred_fallthru
          _
        %v487 = vld [vmem:[%s234] sm:$0xf]
        %v488 = vld [vmem:[#allocation2] sm:$0xf]
        %vm489 = vcmask 64512
        %v491 = vsel %vm489, %v487, 0
        %vm493 = vcmask 1043456
        %v495 = vsel %vm493, %v488, 0
        %497 = vmatprep.subr.bf16.mxu0 0
        %498 = vmatpush1.bf16.msra.mxu0 0
        %499 = vmatprep.subr.bf16.mxu0 0
        %500 = vmatpush1.bf16.msra.mxu0 0
        %501 = vmatprep.subr.bf16.mxu0 0
        %502 = vmatpush1.bf16.msra.mxu0 0
        %503 = vmatprep.subr.bf16.mxu0 0
        %504 = vmatpush1.bf16.msra.mxu0 0
        %505 = vmatprep.subr.bf16.mxu0 0
        %506 = vmatpush1.bf16.msra.mxu0 0
        %507 = vmatprep.subr.bf16.mxu0 0
        %508 = vmatpush1.bf16.msra.mxu0 0
        %509 = vmatprep.subr.bf16.mxu0 0
        %510 = vmatpush1.bf16.msra.mxu0 0
        %511 = vmatprep.subr.bf16.mxu0 0
        %512 = vmatpush1.bf16.msra.mxu0 %v495
        %513 = vmatprep.subr.bf16.mxu0 0
        %514 = vmatpush2.bf16.msra.mxu0 0
        %515 = vmatprep.subr.bf16.mxu0 0
        %516 = vmatpush2.bf16.msra.mxu0 0
        %517 = vmatprep.subr.bf16.mxu0 0
        %518 = vmatpush2.bf16.msra.mxu0 0
        %519 = vmatprep.subr.bf16.mxu0 0
        %520 = vmatpush2.bf16.msra.mxu0 0
        %521 = vmatprep.subr.bf16.mxu0 0
        %522 = vmatpush2.bf16.msra.mxu0 0
        %523 = vmatprep.subr.bf16.mxu0 0
        %524 = vmatpush2.bf16.msra.mxu0 0
        %525 = vmatprep.subr.bf16.mxu0 0
        %526 = vmatpush2.bf16.msra.mxu0 0
        %527 = vmatprep.subr.bf16.mxu0 0
        %528 = vmatpush2.bf16.msra.mxu0 0
        %529 = vmatprep.mubr.bf16.mxu0 0
        %530 = vmatmul.mubr.bf16.gmra.mxu0 %v491
        %v531 = vpop.f32.mrf.mxu0
        %v532 = vadd.f32 0.0, %v531
        %v533 = vpop.f32.mrf.mxu0
        %v534 = vpop.f32.mrf.mxu0
        %v535 = vpop.f32.mrf.mxu0
        %536 = vdwg.mxu0
        %s537 = smul.u32 %s23, 8
        %s538 = scalar_lea.vmem [#allocation3], %s537
        %v539 = vld [vmem:[%s538] sm:$0xff]
        %v540 = vmul.f32 %v532, %v539
        %v541 = vpack.c.bf16 %v540, %v540
        %v542 = vld [vmem:[%s3] sm:$0xf]
        %v543 = vld [vmem:[%s3 + $0x4] sm:$0xf]
        %v544 = vld [vmem:[%s3 + $0x8] sm:$0xf]
        %v545 = vld [vmem:[%s3 + $0xc] sm:$0xf]
        %v546 = vld [vmem:[%s3 + $0x10] sm:$0xf]
        %v547 = vld [vmem:[%s3 + $0x14] sm:$0xf]
        %v548 = vld [vmem:[%s3 + $0x18] sm:$0xf]
        %v549 = vld [vmem:[%s3 + $0x1c] sm:$0xf]
        %v550 = vld [vmem:[%s3 + $0x20] sm:$0xf]
        %v551 = vld [vmem:[%s3 + $0x24] sm:$0xf]
        %v552 = vld [vmem:[%s3 + $0x28] sm:$0xf]
        %v553 = vld [vmem:[%s3 + $0x2c] sm:$0xf]
        %v554 = vld [vmem:[%s3 + $0x30] sm:$0xf]
        %v555 = vld [vmem:[%s3 + $0x34] sm:$0xf]
        %v556 = vld [vmem:[%s3 + $0x38] sm:$0xf]
        %v557 = vld [vmem:[%s3 + $0x3c] sm:$0xf]
        %v574 = vunpack.c.l.b16 %v542
        %v575 = vunpack.c.l.b16 %v543
        %v576 = vunpack.c.l.b16 %v544
        %v577 = vunpack.c.l.b16 %v545
        %v578 = vunpack.c.l.b16 %v546
        %v579 = vunpack.c.l.b16 %v547
        %v580 = vunpack.c.l.b16 %v548
        %v581 = vunpack.c.l.b16 %v549
        %v582 = vunpack.c.l.b16 %v550
        %v583 = vunpack.c.l.b16 %v551
        %v584 = vunpack.c.l.b16 %v552
        %v585 = vunpack.c.l.b16 %v553
        %v586 = vunpack.c.l.b16 %v554
        %v587 = vunpack.c.l.b16 %v555
        %v588 = vunpack.c.l.b16 %v556
        %v589 = vunpack.c.l.b16 %v557
        %v590 = vpack.c.b16 %v575, %v574
        %v591 = vpack.c.b16 %v577, %v576
        %v592 = vpack.c.b16 %v579, %v578
        %v593 = vpack.c.b16 %v581, %v580
        %v594 = vpack.c.b16 %v583, %v582
        %v595 = vpack.c.b16 %v585, %v584
        %v596 = vpack.c.b16 %v587, %v586
        %v597 = vpack.c.b16 %v589, %v588
        %606 = vmatprep.subr.bf16.mxu0 0
        %607 = vmatpush1.bf16.msra.mxu0 %v597
        %608 = vmatprep.subr.bf16.mxu0 0
        %609 = vmatpush1.bf16.msra.mxu0 %v596
        %610 = vmatprep.subr.bf16.mxu0 0
        %611 = vmatpush1.bf16.msra.mxu0 %v595
        %612 = vmatprep.subr.bf16.mxu0 0
        %613 = vmatpush1.bf16.msra.mxu0 %v594
        %614 = vmatprep.subr.bf16.mxu0 0
        %615 = vmatpush1.bf16.msra.mxu0 %v593
        %616 = vmatprep.subr.bf16.mxu0 0
        %617 = vmatpush1.bf16.msra.mxu0 %v592
        %618 = vmatprep.subr.bf16.mxu0 0
        %619 = vmatpush1.bf16.msra.mxu0 %v591
        %620 = vmatprep.subr.bf16.mxu0 0
        %621 = vmatpush1.bf16.msra.mxu0 %v590
        %622 = vmatprep.subr.bf16.mxu0 0
        %623 = vmatpush2.bf16.msra.mxu0 0
        %624 = vmatprep.subr.bf16.mxu0 0
        %625 = vmatpush2.bf16.msra.mxu0 0
        %626 = vmatprep.subr.bf16.mxu0 0
        %627 = vmatpush2.bf16.msra.mxu0 0
        %628 = vmatprep.subr.bf16.mxu0 0
        %629 = vmatpush2.bf16.msra.mxu0 0
        %630 = vmatprep.subr.bf16.mxu0 0
        %631 = vmatpush2.bf16.msra.mxu0 0
        %632 = vmatprep.subr.bf16.mxu0 0
        %633 = vmatpush2.bf16.msra.mxu0 0
        %634 = vmatprep.subr.bf16.mxu0 0
        %635 = vmatpush2.bf16.msra.mxu0 0
        %636 = vmatprep.subr.bf16.mxu0 0
        %637 = vmatpush2.bf16.msra.mxu0 0
        %638 = vmatprep.mubr.bf16.mxu0 0
        %639 = vmatmul.mubr.bf16.gmra.mxu0 %v541
        %v640 = vpop.f32.mrf.mxu0
        %v641 = vadd.f32 0.0, %v640
        %v642 = vpop.f32.mrf.mxu0
        %v643 = vpop.f32.mrf.mxu0
        %v644 = vpop.f32.mrf.mxu0
        %645 = vdwg.mxu0
        %646 = vst [vmem:[%s223] sm:$0xff] %v641
        %s647 = sand.u32 %s136, 1
        %s648 = scalar_lea.sflag [#allocation5], %s647
        %s649 = sand.u32 %s136, 1
        %s650 = smul.addr %s649, 8
        %s651 = scalar_lea.vmem [#allocation4], %s650
        // Predicated region
        $region41: #{nonlinear_attention.1} parent=35 // pred_check
          %p652 = pneg %p146
        $region42: #{nonlinear_attention.1} parent=35 // pred_check_branch
          %654 = sbr.rel (%p652) target = $region44
        $region43: #{nonlinear_attention.1} parent=35 // pred_region
          %s656 = ssub.s32 128, 128
          %657 = vsyncadd %s648, %s656
          %s658 = sadd.s32 %s23, %s22
          %s659 = smul.addr %s658, 128
          %s660 = scalar_lea.hbm %s4, %s659
          %s662 = sshll.u32 %s651, 4
          %s663 = int_to_ptr.vmem [resolvable:$true] %s662
          %665 = dma.vmem_to_hbm [thread:$0]  %s663, 128, %s660, %s648
        $region44: #{nonlinear_attention.1} parent=35 // pred_fallthru
          _
      $region36: #{nonlinear_attention.1} parent=5 // pred_fallthru
        _
      %p666 = scmp.le.s32.totalorder 2, %s13
      // Predicated region
      $region45: #{nonlinear_attention.1} parent=5 // pred_check
        %p667 = pneg %p666
      $region46: #{nonlinear_attention.1} parent=5 // pred_check_branch
        %669 = sbr.rel (%p667) target = $region48
      $region47: #{nonlinear_attention.1} parent=5 // pred_region
        %s670 = ssub.s32 %s13, 2
        // Predicated region
        $region49: #{nonlinear_attention.1} parent=47 // pred_check
          %p671 = pneg %p152
        $region50: #{nonlinear_attention.1} parent=47 // pred_check_branch
          %673 = sbr.rel (%p671) target = $region52
        $region51: #{nonlinear_attention.1} parent=47 // pred_region
          %s674 = sand.u32 %s137, 1
          %s675 = scalar_lea.sflag [#allocation5], %s674
          %s676 = sand.u32 %s137, 1
          %s677 = smul.addr %s676, 8
          %s678 = scalar_lea.vmem [#allocation4], %s677
          %679 = dma.done %s675, 128
        $region52: #{nonlinear_attention.1} parent=47 // pred_fallthru
          _
      $region48: #{nonlinear_attention.1} parent=5 // pred_fallthru
        _
    $region6: #{nonlinear_attention.1} parent=1 // loop_footer
      %s17 = sadd.s32 1, %s13
    $region7: #{nonlinear_attention.1} parent=1 // loop_footer_branch
      %12 = sbr.rel target = $region3
    $region8: #{nonlinear_attention.1} parent=1 // loop_exit
      _
    %680 = vsyncpa [#allocation5], 1
    %s681 = scalar_lea.sflag [#allocation5], 1
    %682 = vsyncpa %s681, 1

</llo_original>
